<compile_context>
chip_gen: v7x
topology: tpu7x:2x2x1
jax: 0.10.0
libtpu: 0.0.40
codegen_flags: <defaults>
</compile_context>

<pallas_src>
import functools

import jax
import jax.numpy as jnp
from jax.experimental import pallas as pl
from jax.experimental.pallas import tpu as pltpu


def _semi_bbox_loss_kernel(src_ref, tgt_ref, match_ref, score_ref, out_ref,
                           acc_sum_ref, acc_cnt_ref, *,
                           scale, conf_threshold, match_threshold, weighted):
    # src_ref / tgt_ref     : (F, TILE_N) f32 in VMEM   (F = 24 for corner_loss)
    # match_ref / score_ref : (1, TILE_N) f32 in VMEM
    # out_ref               : (1, 1) f32 in SMEM (written on the last grid step)
    # acc_sum_ref/acc_cnt_ref : (1, TILE_N) f32 VMEM scratch accumulators
    i = pl.program_id(0)

    @pl.when(i == 0)
    def _():
        acc_sum_ref[...] = jnp.zeros_like(acc_sum_ref)
        acc_cnt_ref[...] = jnp.zeros_like(acc_cnt_ref)

    match = match_ref[...]                                            # (1, T)
    score = score_ref[...]                                            # (1, T)
    maskf = ((match > match_threshold) &
             (score > conf_threshold)).astype(jnp.float32)            # (1, T)
    w = maskf * score if weighted else maskf                          # (1, T)

    # |src - tgt| summed over the feature (sublane) axis; the per-box mean
    # factor (1/F) and loss_weight are folded into `scale` at finalize.
    per_lane = jnp.sum(jnp.abs(src_ref[...] - tgt_ref[...]),
                       axis=0, keepdims=True)                         # (1, T)

    acc_sum_ref[...] += per_lane * w
    acc_cnt_ref[...] += maskf

    @pl.when(i == pl.num_programs(0) - 1)
    def _():
        masked_sum = jnp.sum(acc_sum_ref[...])
        cnt = jnp.sum(acc_cnt_ref[...])
        out_ref[0, 0] = jnp.where(
            cnt > 0.0,
            scale * masked_sum / jnp.maximum(cnt, 1.0),
            jnp.float32(0.0))


def _round_up(x, m):
    return ((x + m - 1) // m) * m


def semi_bbox_loss(source_corners, target_corners, match_scores, scores, *,
                   reduction='mean', loss_weight=0.1, loss_type='corner_loss',
                   loss_mode='l1', conf_threshold=0.5, match_threshold=0.2,
                   max_tile_n=8192):
    """JAX/Pallas equivalent of SemiBboxLoss.forward (returns a scalar)."""
    assert reduction == 'mean'
    n = source_corners.shape[0]
    if n == 0:
        return jnp.float32(0.0)

    src = jnp.asarray(source_corners, jnp.float32).reshape(n, -1)     # (N, F)
    tgt = jnp.asarray(target_corners, jnp.float32).reshape(n, -1)
    f_dim = src.shape[1]

    # Lane-dense layout: boxes on the lane (last) axis, features on sublanes.
    src = src.T                                                       # (F, N)
    tgt = tgt.T
    match = jnp.asarray(match_scores, jnp.float32).reshape(1, n)      # (1, N)
    conf = jnp.asarray(scores, jnp.float32).reshape(1, n)             # (1, N)

    # Tile selection that minimises padding: split the 128-rounded length into
    # equal 128-aligned tiles of at most max_tile_n lanes.
    n128 = _round_up(n, 128)
    num_tiles = -(-n128 // int(max_tile_n))
    tile_n = _round_up(-(-n128 // num_tiles), 128)
    n_pad = tile_n * num_tiles

    if n_pad != n:
        pad = n_pad - n
        src = jnp.pad(src, ((0, 0), (0, pad)))
        tgt = jnp.pad(tgt, ((0, 0), (0, pad)))
        # Padded tail boxes get match/conf = -1e30 -> mask is always False, so
        # they contribute nothing to either the masked sum or the count.
        match = jnp.pad(match, ((0, 0), (0, pad)), constant_values=-1e30)
        conf = jnp.pad(conf, ((0, 0), (0, pad)), constant_values=-1e30)

    scale = loss_weight / f_dim if loss_type == 'corner_loss' else loss_weight

    kernel = functools.partial(
        _semi_bbox_loss_kernel,
        scale=float(scale),
        conf_threshold=float(conf_threshold),
        match_threshold=float(match_threshold),
        weighted=(loss_mode == 'weighted_l1'),
    )

    out = pl.pallas_call(
        kernel,
        out_shape=jax.ShapeDtypeStruct((1, 1), jnp.float32),
        grid=(num_tiles,),
        in_specs=[
            pl.BlockSpec((f_dim, tile_n), lambda i: (0, i)),  # src corners
            pl.BlockSpec((f_dim, tile_n), lambda i: (0, i)),  # tgt corners
            pl.BlockSpec((1, tile_n), lambda i: (0, i)),      # match_scores
            pl.BlockSpec((1, tile_n), lambda i: (0, i)),      # scores
        ],
        out_specs=pl.BlockSpec((1, 1), lambda i: (0, 0),
                               memory_space=pltpu.MemorySpace.SMEM),
        scratch_shapes=[
            pltpu.VMEM((1, tile_n), jnp.float32),   # masked-sum accumulator
            pltpu.VMEM((1, tile_n), jnp.float32),   # count accumulator
        ],
        compiler_params=pltpu.CompilerParams(
            dimension_semantics=("arbitrary",),
            vmem_limit_bytes=32 * 1024 * 1024,
        ),
    )(src, tgt, match, conf)
    return out[0, 0]


def _reference_loss(src_corners, tgt_corners, match_scores, scores, *,
                    loss_weight=0.1, conf_threshold=0.5, match_threshold=0.2,
                    loss_mode='l1'):
    # Pure-JAX reference mirroring the PyTorch forward (corner_loss / mean).
    mask = (match_scores > match_threshold) & (scores > conf_threshold)
    maskf = mask.astype(jnp.float32)
    per_box = jnp.mean(jnp.abs(src_corners - tgt_corners), axis=(1, 2))
    if loss_mode == 'weighted_l1':
        per_box = per_box * scores
    cnt = jnp.sum(maskf)
    masked_mean = jnp.sum(per_box * maskf) / jnp.maximum(cnt, 1.0)
    return jnp.where(cnt > 0.0, loss_weight * masked_mean, 0.0)


if __name__ == "__main__":
    key = jax.random.PRNGKey(0)
    k1, k2, k3, k4 = jax.random.split(key, 4)

    N = 8  # number of boxes
    # 3D box corners: (N, 8, 3), like BaseInstance3DBoxes.corners in det3d.
    source_corners = jax.random.normal(k1, (N, 8, 3), dtype=jnp.float32) * 2.0
    target_corners = source_corners + 0.1 * jax.random.normal(
        k2, (N, 8, 3), dtype=jnp.float32)
    match_scores = jax.random.uniform(k3, (N,), dtype=jnp.float32)  # iou/ssim
    scores = jax.random.uniform(k4, (N,), dtype=jnp.float32)        # confidences

    loss = semi_bbox_loss(source_corners, target_corners, match_scores, scores)
    loss = jax.block_until_ready(loss)
    ref = _reference_loss(source_corners, target_corners, match_scores, scores)
    assert jnp.allclose(loss, ref, atol=1e-6, rtol=1e-5), (loss, ref)

    # weighted_l1 mode.
    wloss = semi_bbox_loss(source_corners, target_corners, match_scores,
                           scores, loss_mode='weighted_l1')
    wloss = jax.block_until_ready(wloss)
    wref = _reference_loss(source_corners, target_corners, match_scores,
                           scores, loss_mode='weighted_l1')
    assert jnp.allclose(wloss, wref, atol=1e-6, rtol=1e-5), (wloss, wref)

    # "No matches" branch must return exactly 0.0.
    zero_loss = semi_bbox_loss(source_corners, target_corners,
                               jnp.zeros((N,), jnp.float32),
                               jnp.zeros((N,), jnp.float32))
    zero_loss = jax.block_until_ready(zero_loss)
    assert float(zero_loss) == 0.0

    # Exercise the multi-tile grid + accumulator path (padding + 3 tiles).
    M = 300
    kk = jax.random.split(jax.random.PRNGKey(1), 4)
    sc = jax.random.normal(kk[0], (M, 8, 3), dtype=jnp.float32)
    tc = sc + 0.05 * jax.random.normal(kk[1], (M, 8, 3), dtype=jnp.float32)
    ms = jax.random.uniform(kk[2], (M,), dtype=jnp.float32)
    cs = jax.random.uniform(kk[3], (M,), dtype=jnp.float32)
    tiled_loss = semi_bbox_loss(sc, tc, ms, cs, max_tile_n=128)
    tiled_loss = jax.block_until_ready(tiled_loss)
    tiled_ref = _reference_loss(sc, tc, ms, cs)
    assert jnp.allclose(tiled_loss, tiled_ref, atol=1e-6, rtol=1e-5), (
        tiled_loss, tiled_ref)

    print("KERNEL_OK")
</pallas_src>

<mosaic_0001>
module attributes {stable_mosaic.version = 11 : i64} {
  func.func @_semi_bbox_loss_kernel(%arg0: i32, %arg1: memref<24x128xf32, #tpu.memory_space<vmem>>, %arg2: memref<24x128xf32, #tpu.memory_space<vmem>>, %arg3: memref<1x128xf32, #tpu.memory_space<vmem>>, %arg4: memref<1x128xf32, #tpu.memory_space<vmem>>, %arg5: memref<1x1xf32, #tpu.memory_space<smem>>, %arg6: memref<1x128xf32, #tpu.memory_space<vmem>>, %arg7: memref<1x128xf32, #tpu.memory_space<vmem>>) attributes {dimension_semantics = [#tpu.dimension_semantics<arbitrary>], iteration_bounds = array<i64: 1>, scalar_prefetch = 0 : i64, scratch_operands = 2 : i64, tpu.core_type = #tpu.core_type<tc>, window_params = [{transform_indices = @transform_0, window_bounds = array<i64: 24, 128>}, {transform_indices = @transform_1, window_bounds = array<i64: 24, 128>}, {transform_indices = @transform_2, window_bounds = array<i64: 1, 128>}, {transform_indices = @transform_3, window_bounds = array<i64: 1, 128>}, {transform_indices = @transform_4, window_bounds = array<i64: 1, 1>}]} {
    %c0_i32 = arith.constant 0 : i32
    %0 = arith.cmpi eq, %arg0, %c0_i32 : i32
    %1 = arith.extui %0 : i1 to i32
    %c0_i32_0 = arith.constant 0 : i32
    %2 = arith.cmpi ne, %1, %c0_i32_0 : i32
    scf.if %2 {
      %cst_20 = arith.constant 0.000000e+00 : f32
      %28 = vector.broadcast %cst_20 : f32 to vector<1x128xf32>
      %c0_21 = arith.constant 0 : index
      %c0_22 = arith.constant 0 : index
      %29 = vector.load %arg6[%c0_21, %c0_22] : memref<1x128xf32, #tpu.memory_space<vmem>>, vector<1x128xf32>
      tpu.vector_store %arg6[%c0_21, %c0_22], %28 {strides = array<i32>} : memref<1x128xf32, #tpu.memory_space<vmem>>, vector<1x128xf32>,
      %cst_23 = arith.constant 0.000000e+00 : f32
      %30 = vector.broadcast %cst_23 : f32 to vector<1x128xf32>
      %c0_24 = arith.constant 0 : index
      %c0_25 = arith.constant 0 : index
      %31 = vector.load %arg7[%c0_24, %c0_25] : memref<1x128xf32, #tpu.memory_space<vmem>>, vector<1x128xf32>
      tpu.vector_store %arg7[%c0_24, %c0_25], %30 {strides = array<i32>} : memref<1x128xf32, #tpu.memory_space<vmem>>, vector<1x128xf32>,
    } else {
    }
    %c0 = arith.constant 0 : index
    %c0_1 = arith.constant 0 : index
    %3 = vector.load %arg3[%c0, %c0_1] : memref<1x128xf32, #tpu.memory_space<vmem>>, vector<1x128xf32>
    %c0_2 = arith.constant 0 : index
    %c0_3 = arith.constant 0 : index
    %4 = vector.load %arg4[%c0_2, %c0_3] : memref<1x128xf32, #tpu.memory_space<vmem>>, vector<1x128xf32>
    %cst = arith.constant 2.000000e-01 : f32
    %5 = vector.broadcast %cst : f32 to vector<1x128xf32>
    %6 = arith.cmpf ogt, %3, %5 : vector<1x128xf32>
    %cst_4 = arith.constant 5.000000e-01 : f32
    %7 = vector.broadcast %cst_4 : f32 to vector<1x128xf32>
    %8 = arith.cmpf ogt, %4, %7 : vector<1x128xf32>
    %9 = arith.andi %6, %8 : vector<1x128xi1>
    %10 = arith.extui %9 : vector<1x128xi1> to vector<1x128xi32>
    %11 = arith.sitofp %10 : vector<1x128xi32> to vector<1x128xf32>
    %c0_5 = arith.constant 0 : index
    %c0_6 = arith.constant 0 : index
    %12 = vector.load %arg1[%c0_5, %c0_6] : memref<24x128xf32, #tpu.memory_space<vmem>>, vector<24x128xf32>
    %c0_7 = arith.constant 0 : index
    %c0_8 = arith.constant 0 : index
    %13 = vector.load %arg2[%c0_7, %c0_8] : memref<24x128xf32, #tpu.memory_space<vmem>>, vector<24x128xf32>
    %14 = arith.subf %12, %13 : vector<24x128xf32>
    %15 = math.absf %14 : vector<24x128xf32>
    %cst_9 = arith.constant dense<0.000000e+00> : vector<128xf32>
    %16 = vector.multi_reduction <add>, %15, %cst_9 [0] : vector<24x128xf32> to vector<128xf32>
    %17 = vector.shape_cast %16 : vector<128xf32> to vector<1x128xf32>
    %c0_10 = arith.constant 0 : index
    %c0_11 = arith.constant 0 : index
    %18 = vector.load %arg6[%c0_10, %c0_11] : memref<1x128xf32, #tpu.memory_space<vmem>>, vector<1x128xf32>
    %19 = arith.mulf %17, %11 : vector<1x128xf32>
    %20 = arith.addf %18, %19 : vector<1x128xf32>
    %c0_12 = arith.constant 0 : index
    %c0_13 = arith.constant 0 : index
    %21 = vector.load %arg6[%c0_12, %c0_13] : memref<1x128xf32, #tpu.memory_space<vmem>>, vector<1x128xf32>
    tpu.vector_store %arg6[%c0_12, %c0_13], %20 {strides = array<i32>} : memref<1x128xf32, #tpu.memory_space<vmem>>, vector<1x128xf32>,
    %c0_14 = arith.constant 0 : index
    %c0_15 = arith.constant 0 : index
    %22 = vector.load %arg7[%c0_14, %c0_15] : memref<1x128xf32, #tpu.memory_space<vmem>>, vector<1x128xf32>
    %23 = arith.addf %22, %11 : vector<1x128xf32>
    %c0_16 = arith.constant 0 : index
    %c0_17 = arith.constant 0 : index
    %24 = vector.load %arg7[%c0_16, %c0_17] : memref<1x128xf32, #tpu.memory_space<vmem>>, vector<1x128xf32>
    tpu.vector_store %arg7[%c0_16, %c0_17], %23 {strides = array<i32>} : memref<1x128xf32, #tpu.memory_space<vmem>>, vector<1x128xf32>,
    %c0_i32_18 = arith.constant 0 : i32
    %25 = arith.cmpi eq, %arg0, %c0_i32_18 : i32
    %26 = arith.extui %25 : i1 to i32
    %c0_i32_19 = arith.constant 0 : i32
    %27 = arith.cmpi ne, %26, %c0_i32_19 : i32
    scf.if %27 {
      %c0_20 = arith.constant 0 : index
      %c0_21 = arith.constant 0 : index
      %28 = vector.load %arg6[%c0_20, %c0_21] : memref<1x128xf32, #tpu.memory_space<vmem>>, vector<1x128xf32>
      %29 = vector.shape_cast %28 : vector<1x128xf32> to vector<1x1x128xf32>
      %cst_22 = arith.constant dense<0.000000e+00> : vector<1xf32>
      %30 = vector.multi_reduction <add>, %29, %cst_22 [1, 2] : vector<1x1x128xf32> to vector<1xf32>
      %31 = vector.shape_cast %30 : vector<1xf32> to vector<1x1x1xf32>
      %32 = vector.extract %31[0, 0, 0] : f32 from vector<1x1x1xf32>
      %c0_23 = arith.constant 0 : index
      %c0_24 = arith.constant 0 : index
      %33 = vector.load %arg7[%c0_23, %c0_24] : memref<1x128xf32, #tpu.memory_space<vmem>>, vector<1x128xf32>
      %34 = vector.shape_cast %33 : vector<1x128xf32> to vector<1x1x128xf32>
      %cst_25 = arith.constant dense<0.000000e+00> : vector<1xf32>
      %35 = vector.multi_reduction <add>, %34, %cst_25 [1, 2] : vector<1x1x128xf32> to vector<1xf32>
      %36 = vector.shape_cast %35 : vector<1xf32> to vector<1x1x1xf32>
      %37 = vector.extract %36[0, 0, 0] : f32 from vector<1x1x1xf32>
      %cst_26 = arith.constant 0.000000e+00 : f32
      %38 = arith.cmpf ogt, %37, %cst_26 : f32
      %cst_27 = arith.constant 0.00416666688 : f32
      %39 = arith.mulf %cst_27, %32 : f32
      %cst_28 = arith.constant 1.000000e+00 : f32
      %40 = arith.maximumf %37, %cst_28 : f32
      %41 = arith.divf %39, %40 : f32
      %cst_29 = arith.constant 0.000000e+00 : f32
      %42 = arith.select %38, %41, %cst_29 : f32
      %c0_30 = arith.constant 0 : index
      %c0_31 = arith.constant 0 : index
      %43 = memref.load %arg5[%c0_30, %c0_31] : memref<1x1xf32, #tpu.memory_space<smem>>
      memref.store %42, %arg5[%c0_30, %c0_31] : memref<1x1xf32, #tpu.memory_space<smem>>
    } else {
    }
    return
  }
  func.func @transform_0(%arg0: i32) -> (i32, i32) {
    %c0_i32 = arith.constant 0 : i32
    %c0_i32_0 = arith.constant 0 : i32
    return %c0_i32, %arg0 : i32, i32
  }
  func.func @transform_1(%arg0: i32) -> (i32, i32) {
    %c0_i32 = arith.constant 0 : i32
    %c0_i32_0 = arith.constant 0 : i32
    return %c0_i32, %arg0 : i32, i32
  }
  func.func @transform_2(%arg0: i32) -> (i32, i32) {
    %c0_i32 = arith.constant 0 : i32
    %c0_i32_0 = arith.constant 0 : i32
    return %c0_i32, %arg0 : i32, i32
  }
  func.func @transform_3(%arg0: i32) -> (i32, i32) {
    %c0_i32 = arith.constant 0 : i32
    %c0_i32_0 = arith.constant 0 : i32
    return %c0_i32, %arg0 : i32, i32
  }
  func.func @transform_4(%arg0: i32) -> (i32, i32) {
    %c0_i32 = arith.constant 0 : i32
    %c0_i32_0 = arith.constant 0 : i32
    %c0_i32_1 = arith.constant 0 : i32
    return %c0_i32, %c0_i32_0 : i32, i32
  }
}

</mosaic_0001>

<llo_original>
// kernel: tpu_custom_call.1
$region0: #{tpu_custom_call.1}
  #allocation0 [shape = 'u32[]', space=smem, size = 0x4, offset = 0x4, fixed_abs, tag = 'smem constant byte address 0x4 - core index']
  #allocation1 [shape = 'u32[144,128]{1,0:T(1,128)}', space=vmem, size = 0x12000, scoped, tag = 'internal scratch']
  #allocation2 [shape = 'f32[1,128]{1,0:T(1,128)}', space=vmem, size = 0x200, scoped, tag = 'scratch operand']
  #allocation3 [shape = 'f32[1,128]{1,0:T(1,128)}', space=vmem, size = 0x200, scoped, tag = 'scratch operand']
  %s0 = inlined_call_operand.hbm [shape: f32[24,128], index: 0, kind: input, shape index: {}]
  %s1 = inlined_call_operand.hbm [shape: f32[24,128], index: 1, kind: input, shape index: {}]
  %s2 = inlined_call_operand.vmem [shape: f32[1,128], index: 2, kind: input, shape index: {}]
  %s3 = inlined_call_operand.vmem [shape: f32[1,128], index: 3, kind: input, shape index: {}]
  %s4 = inlined_call_operand.hbm [shape: f32[1,1], index: 4, kind: output, shape index: {}]
  %s5 = sld [smem:[#allocation0]]
  $region42: #{tpu_custom_call.1} parent=0
    _
  %s7 = ssub.s32 1, %s5
  %s8 = scalar_select 0, %s7, %s5
  $region1: #{tpu_custom_call.1} parent=0
    #allocation4 [shape = 'u8[12288]{0}', space=vmem, size = 0x3000, scoped, tag = 'input window, operand 0, single buffered']
    #allocation5 [shape = 's32[1]{0}', space=sflag, size = 0x4, scoped, tag = 'scoped memory for tpu_custom_call.1']
    #allocation6 [shape = 's32[1]{0}', space=sflag, size = 0x4, scoped, tag = 'scoped memory for tpu_custom_call.1']
    #allocation7 [shape = 'u8[12288]{0}', space=vmem, size = 0x3000, scoped, tag = 'input window, operand 1, single buffered']
    #allocation8 [shape = 's32[1]{0}', space=sflag, size = 0x4, scoped, tag = 'scoped memory for tpu_custom_call.1']
    #allocation9 [shape = 'u8[512]{0}', space=smem, size = 0x200, scoped, tag = 'output window, operand 0, single buffered']
    %9 = vsyncpa [#allocation5], 0
    %10 = vsyncpa [#allocation8], 0
    %11 = vsyncpa [#allocation6], 0
    // Predicated region
    $region2: #{tpu_custom_call.1} parent=1 // pred_check
      _
    $region3: #{tpu_custom_call.1} parent=1 // pred_check_branch
      %13 = sbr.rel (0) target = $region5
    $region4: #{tpu_custom_call.1} parent=1 // pred_region
      %s15 = ssub.s32 384, 384
      %16 = vsyncadd [#allocation5], %s15
      %s17 = sshll.u32 [#allocation4], 4
      %s18 = int_to_ptr.vmem [resolvable:$true] %s17
      %23 = dma.hbm_to_vmem [thread:$0]  %s0, 384, %s18, [#allocation5], 128, 128, 8
    $region5: #{tpu_custom_call.1} parent=1 // pred_fallthru
      _
    // Predicated region
    $region6: #{tpu_custom_call.1} parent=1 // pred_check
      _
    $region7: #{tpu_custom_call.1} parent=1 // pred_check_branch
      %25 = sbr.rel (0) target = $region9
    $region8: #{tpu_custom_call.1} parent=1 // pred_region
      %s27 = ssub.s32 384, 384
      %28 = vsyncadd [#allocation8], %s27
      %s29 = sshll.u32 [#allocation7], 4
      %s30 = int_to_ptr.vmem [resolvable:$true] %s29
      %35 = dma.hbm_to_vmem [thread:$0]  %s1, 384, %s30, [#allocation8], 128, 128, 8
    $region9: #{tpu_custom_call.1} parent=1 // pred_fallthru
      _
    // Predicated region
    $region10: #{tpu_custom_call.1} parent=1 // pred_check
      _
    $region11: #{tpu_custom_call.1} parent=1 // pred_check_branch
      %37 = sbr.rel (0) target = $region13
    $region12: #{tpu_custom_call.1} parent=1 // pred_region
      _
    $region13: #{tpu_custom_call.1} parent=1 // pred_fallthru
      _
    // Predicated region
    $region14: #{tpu_custom_call.1} parent=1 // pred_check
      _
    $region15: #{tpu_custom_call.1} parent=1 // pred_check_branch
      %39 = sbr.rel (0) target = $region17
    $region16: #{tpu_custom_call.1} parent=1 // pred_region
      _
    $region17: #{tpu_custom_call.1} parent=1 // pred_fallthru
      _
    // Predicated region
    $region18: #{tpu_custom_call.1} parent=1 // pred_check
      _
    $region19: #{tpu_custom_call.1} parent=1 // pred_check_branch
      %41 = sbr.rel (0) target = $region21
    $region20: #{tpu_custom_call.1} parent=1 // pred_region
      %42 = dma.done [#allocation5], 384
    $region21: #{tpu_custom_call.1} parent=1 // pred_fallthru
      _
    // Predicated region
    $region22: #{tpu_custom_call.1} parent=1 // pred_check
      _
    $region23: #{tpu_custom_call.1} parent=1 // pred_check_branch
      %44 = sbr.rel (0) target = $region25
    $region24: #{tpu_custom_call.1} parent=1 // pred_region
      %45 = dma.done [#allocation8], 384
    $region25: #{tpu_custom_call.1} parent=1 // pred_fallthru
      _
    %p46 = scmp.eq.s32.totalorder 0, 0
    // Predicated region
    $region26: #{tpu_custom_call.1} parent=1 // pred_check
      %p47 = pneg %p46
    $region27: #{tpu_custom_call.1} parent=1 // pred_check_branch
      %49 = sbr.rel (%p47) target = $region29
    $region28: #{tpu_custom_call.1} parent=1 // pred_region
      %50 = vst [vmem:[#allocation2] sm:$0x1] 0.0
      %51 = vst [vmem:[#allocation3] sm:$0x1] 0.0
    $region29: #{tpu_custom_call.1} parent=1 // pred_fallthru
      _
    %v52 = vld [vmem:[%s2] sm:$0x1]
    %v53 = vld [vmem:[%s3] sm:$0x1]
    %vm54 = vcmp.gt.f32.partialorder %v52, 0.2
    %vm55 = vcmp.gt.f32.partialorder %v53, 0.5
    %vm56 = vmand %vm54, %vm55
    %v57 = vsel %vm56, 1, 0
    %v58 = vcvt.s32.f32 %v57
    %v59 = vld [vmem:[#allocation4] sm:$0xff]
    %v60 = vld [vmem:[#allocation4 + $0x8] sm:$0xff]
    %v61 = vld [vmem:[#allocation4 + $0x10] sm:$0xff]
    %v62 = vld [vmem:[#allocation7] sm:$0xff]
    %v63 = vld [vmem:[#allocation7 + $0x8] sm:$0xff]
    %v64 = vld [vmem:[#allocation7 + $0x10] sm:$0xff]
    %v65 = vsub.f32 %v59, %v62
    %v66 = vsub.f32 %v60, %v63
    %v67 = vsub.f32 %v61, %v64
    %v68 = vand.u32 2147483647, %v65
    %v69 = vand.u32 2147483647, %v66
    %v70 = vand.u32 2147483647, %v67
    %v71 = vadd.f32 %v68, %v69
    %v72 = vadd.f32 %v71, %v70
    %v73 = vrot.slane %v72, 4
    %v74 = vadd.f32 %v72, %v73
    %v75 = vrot.slane %v74, 2
    %v76 = vadd.f32 %v74, %v75
    %v77 = vrot.slane %v76, 1
    %v78 = vadd.f32 %v76, %v77
    %v79 = vld [vmem:[#allocation2] sm:$0x1]
    %v80 = vmul.f32 %v78, %v58
    %v81 = vadd.f32 %v79, %v80
    %82 = vst [vmem:[#allocation2] sm:$0x1] %v81
    %v83 = vld [vmem:[#allocation3] sm:$0x1]
    %v84 = vadd.f32 %v83, %v58
    %85 = vst [vmem:[#allocation3] sm:$0x1] %v84
    // Predicated region
    $region30: #{tpu_custom_call.1} parent=1 // pred_check
      %p86 = pneg %p46
    $region31: #{tpu_custom_call.1} parent=1 // pred_check_branch
      %88 = sbr.rel (%p86) target = $region33
    $region32: #{tpu_custom_call.1} parent=1 // pred_region
      %v89 = vld [vmem:[#allocation2] sm:$0x1]
      %vm90 = vcmask 1040384
      %v91 = vsel %vm90, %v89, 0.0
      %92 = vadd.xlane.f32.xlu0 %v91
      %v93 = vpop.xlane.xlu0 %92
      %v94 = vrot.slane %v93, 4
      %v95 = vadd.f32 %v93, %v94
      %v96 = vrot.slane %v95, 2
      %v97 = vadd.f32 %v95, %v96
      %v98 = vrot.slane %v97, 1
      %v99 = vadd.f32 %v97, %v98
      %s100 = vtos %v99
      %v101 = vld [vmem:[#allocation3] sm:$0x1]
      %v102 = vsel %vm90, %v101, 0.0
      %103 = vadd.xlane.f32.xlu0 %v102
      %v104 = vpop.xlane.xlu0 %103
      %v105 = vrot.slane %v104, 4
      %v106 = vadd.f32 %v104, %v105
      %v107 = vrot.slane %v106, 2
      %v108 = vadd.f32 %v106, %v107
      %v109 = vrot.slane %v108, 1
      %v110 = vadd.f32 %v108, %v109
      %s111 = vtos %v110
      %p112 = scmp.gt.f32.partialorder %s111, 0.0
      %s113 = smul.f32 %s100, 0.004166667
      %s114 = smax.f32 %s111, 1.0
      %v115 = vstv %s114
      %v116 = vrcp.pop %v115
      %s117 = vtos %v116
      %s118 = smul.f32 %s113, %s117
      %s119 = scalar_select %p112, %s118, 0.0
      %s120 = scalar_lea.smem [#allocation9], 0
      %121 = sst [smem:[%s120]] %s119
    $region33: #{tpu_custom_call.1} parent=1 // pred_fallthru
      _
    // Predicated region
    $region34: #{tpu_custom_call.1} parent=1 // pred_check
      _
    $region35: #{tpu_custom_call.1} parent=1 // pred_check_branch
      %123 = sbr.rel (0) target = $region37
    $region36: #{tpu_custom_call.1} parent=1 // pred_region
      %s125 = ssub.s32 16, 16
      %126 = vsyncadd [#allocation6], %s125
      %129 = dma.smem_to_hbm [#allocation9], 16, %s4, [#allocation6]
    $region37: #{tpu_custom_call.1} parent=1 // pred_fallthru
      _
    // Predicated region
    $region38: #{tpu_custom_call.1} parent=1 // pred_check
      _
    $region39: #{tpu_custom_call.1} parent=1 // pred_check_branch
      %131 = sbr.rel (0) target = $region41
    $region40: #{tpu_custom_call.1} parent=1 // pred_region
      %132 = dma.done [#allocation6], 16
    $region41: #{tpu_custom_call.1} parent=1 // pred_fallthru
      _
    %133 = sfence
    %134 = vsyncpa [#allocation5], 1
    %135 = vsyncpa [#allocation8], 1
    %136 = vsyncpa [#allocation6], 1

</llo_original>
